<compile_context>
chip_gen: v7x
topology: tpu7x:2x2x1
jax: 0.10.0
libtpu: 0.0.40
codegen_flags: <defaults>
</compile_context>

<pallas_src>
import jax
import jax.numpy as jnp
from jax.experimental import pallas as pl
from jax.experimental.pallas import tpu as pltpu


def _round_up(n, m):
    return ((n + m - 1) // m) * m


def _make_kernel(matmul_dtype):
    def discriminator_kernel(x_ref, w1_ref, b1_ref, w2_ref, b2_ref, out_ref):
        # In-kernel cast to the MXU dtype; f32 stays in HBM/VMEM so x is read once.
        x = x_ref[...].astype(matmul_dtype)        # (TB, x_dim)
        w1 = w1_ref[...].astype(matmul_dtype)      # (h_dim, x_dim), PyTorch layout

        # fc1, transposed orientation: hT[k, b] = sum_j W1[k, j] * x[b, j]
        # A @ B^T on the MXU (contract both operands on their lane dim), f32 acc.
        hT = jax.lax.dot_general(
            w1, x,
            dimension_numbers=(((1,), (1,)), ((), ())),
            preferred_element_type=jnp.float32)     # (h_dim, TB)

        # Bias (column, broadcast over lanes) + ReLU on the VPU, in f32.
        hT = jnp.maximum(hT + b1_ref[...], 0.0)

        # fc2: VPU multiply + sublane (XLU) reduction -> (1, TB), batch in lanes.
        # Avoids a skinny M=1 / N=1 MXU matmul entirely.
        logit = jnp.sum(hT * w2_ref[...], axis=0, keepdims=True) + b2_ref[0, 0]

        # Lane-dense store: one (1, TB) row per tile, unmasked vst when TB % 128 == 0.
        out_ref[...] = jax.nn.sigmoid(logit).astype(out_ref.dtype)

    return discriminator_kernel


def discriminator_forward(x, w1, b1, w2, b2, *, block_b=1024,
                          matmul_dtype=jnp.bfloat16, core_parallel=False,
                          vmem_limit_bytes=48 * 1024 * 1024):
    """sigmoid(relu(x @ w1.T + b1) @ w2.T + b2)  (PyTorch nn.Linear semantics).

    x : (B, x_dim) f32
    w1: (h_dim, x_dim)  fc1.weight, PyTorch (out, in) layout
    b1: (h_dim,)        fc1.bias
    w2: (1, h_dim)      fc2.weight
    b2: (1,)            fc2.bias

    core_parallel=True shards the batch grid axis across TensorCores (v7x).
    """
    B, x_dim = x.shape
    h_dim = w1.shape[0]
    assert w1.shape == (h_dim, x_dim)
    assert block_b % 128 == 0, "block_b must be a multiple of 128 (lane-dense output)"

    x = x.astype(jnp.float32)
    w1 = w1.astype(jnp.float32)
    b1c = jnp.asarray(b1, jnp.float32).reshape(h_dim, 1)   # column: broadcasts over lanes
    w2c = jnp.asarray(w2, jnp.float32).reshape(h_dim, 1)   # column: broadcasts over lanes
    b2s = jnp.asarray(b2, jnp.float32).reshape(1, 1)        # scalar -> SMEM

    # --- batch tile selection with a VMEM residency guard -----------------------
    def vmem_estimate(tb):
        f32 = 4
        x_tile = 2 * tb * x_dim * f32          # double-buffered x tile (f32 in VMEM)
        w1_res = 2 * h_dim * x_dim * f32       # conservative: 2 buffers for resident w1
        h_live = 2 * h_dim * tb * f32          # hT f32 intermediate + bf16 copies slack
        out_tl = 2 * 8 * tb * f32              # (1, TB) padded to 8 sublanes, 2 buffers
        vecs = 4 * h_dim * 128 * f32           # b1 / w2 columns, lane-padded, 2 buffers
        return x_tile + w1_res + h_live + out_tl + vecs

    vmem_budget = int(0.8 * vmem_limit_bytes)   # headroom below the scoped limit (v7x-safe)
    TB = B if B <= block_b else block_b         # single exact tile when it fits
    while vmem_estimate(TB) > vmem_budget and TB > 128:
        TB = max(128, _round_up(TB // 2, 128))
    if vmem_estimate(TB) > vmem_budget:
        # TODO(synk): tile x_dim (K) / h_dim with a VMEM accumulator for fc1 weights that
        # exceed the VMEM budget (relevant on v7x's 64 MiB for very large x_dim*h_dim).
        raise NotImplementedError(
            "fc1 weight does not fit the VMEM budget; K/N tiling not implemented")

    num_tiles = pl.cdiv(B, TB)                  # ragged last tile handled by Pallas clipping
    grid = (num_tiles,)

    cost = pl.CostEstimate(
        flops=2 * B * x_dim * h_dim + 5 * B * h_dim,
        transcendentals=2 * B,                  # sigmoid ~ exp + reciprocal per element
        bytes_accessed=int(B * x_dim * 4 + h_dim * x_dim * 4
                           + 2 * h_dim * 4 + 4 + num_tiles * TB * 4),
    )

    dim_sems = (pltpu.CORE_PARALLEL,) if core_parallel else ("parallel",)

    out3 = pl.pallas_call(
        _make_kernel(matmul_dtype),
        out_shape=jax.ShapeDtypeStruct((num_tiles, 1, TB), jnp.float32),
        grid=grid,
        in_specs=[
            pl.BlockSpec((TB, x_dim), lambda i: (i, 0)),        # x: batch-tiled, f32 in HBM
            pl.BlockSpec((h_dim, x_dim), lambda i: (0, 0)),     # w1: VMEM-resident (fetched once)
            pl.BlockSpec((h_dim, 1), lambda i: (0, 0)),         # b1 column
            pl.BlockSpec((h_dim, 1), lambda i: (0, 0)),         # w2 column
            pl.BlockSpec(memory_space=pltpu.MemorySpace.SMEM),  # b2 scalar in SMEM
        ],
        out_specs=pl.BlockSpec((None, 1, TB), lambda i: (i, 0, 0)),  # lane-packed rows
        compiler_params=pltpu.CompilerParams(
            dimension_semantics=dim_sems,
            vmem_limit_bytes=vmem_limit_bytes,
        ),
        cost_estimate=cost,
    )(x, w1, b1c, w2c, b2s)

    # (num_tiles, 1, TB) row-major is already flat batch order: free contiguous reshape,
    # then drop the (discarded) tail rows of a ragged last tile.
    return out3.reshape(num_tiles * TB, 1)[:B]


# ------------------------------- reference / init ----------------------------------

def xavier_normal(key, shape, fan_in, fan_out):
    # Matches torch.nn.init.xavier_normal_: N(0, sqrt(2/(fan_in+fan_out)))
    std = (2.0 / (fan_in + fan_out)) ** 0.5
    return std * jax.random.normal(key, shape, dtype=jnp.float32)


def init_params(key, x_dim, h_dim):
    k1, k2 = jax.random.split(key, 2)
    w1 = xavier_normal(k1, (h_dim, x_dim), x_dim, h_dim)   # fc1.weight (out, in)
    b1 = jnp.zeros((h_dim,), dtype=jnp.float32)            # zeros, per xavier_init
    w2 = xavier_normal(k2, (1, h_dim), h_dim, 1)            # fc2.weight (out, in)
    b2 = jnp.zeros((1,), dtype=jnp.float32)
    return w1, b1, w2, b2


def reference_forward(x, w1, b1, w2, b2):
    h = jnp.maximum(x @ w1.T + b1, 0.0)
    return jax.nn.sigmoid(h @ w2.T + b2)


if __name__ == "__main__":
    key = jax.random.PRNGKey(0)
    k_params, k_x = jax.random.split(key)

    B, x_dim, h_dim = 8, 64, 128
    w1, b1, w2, b2 = init_params(k_params, x_dim, h_dim)
    x = jax.random.normal(k_x, (B, x_dim), dtype=jnp.float32)

    out = jax.block_until_ready(discriminator_forward(x, w1, b1, w2, b2))
    ref = reference_forward(x, w1, b1, w2, b2)
    assert out.shape == (B, 1)
    # bf16 MXU inputs -> compare against the f32 reference at bf16-level tolerance.
    assert jnp.allclose(out, ref, atol=2e-2, rtol=2e-2), "mismatch (single tile)"

    # Multi-tile grid with exact lane-dense 128-wide output rows.
    B2 = 384
    x2 = jax.random.normal(jax.random.PRNGKey(1), (B2, x_dim), dtype=jnp.float32)
    out2 = jax.block_until_ready(
        discriminator_forward(x2, w1, b1, w2, b2, block_b=128))
    ref2 = reference_forward(x2, w1, b1, w2, b2)
    assert out2.shape == (B2, 1)
    assert jnp.allclose(out2, ref2, atol=2e-2, rtol=2e-2), "mismatch (multi tile)"

    # Ragged last tile: no jnp.pad pass over x; boundary block is clipped by Pallas
    # and the garbage tail outputs are sliced off in the wrapper.
    B3 = 300
    x3 = jax.random.normal(jax.random.PRNGKey(2), (B3, x_dim), dtype=jnp.float32)
    out3 = jax.block_until_ready(
        discriminator_forward(x3, w1, b1, w2, b2, block_b=128))
    ref3 = reference_forward(x3, w1, b1, w2, b2)
    assert out3.shape == (B3, 1)
    assert jnp.allclose(out3, ref3, atol=2e-2, rtol=2e-2), "mismatch (ragged tile)"

    print("KERNEL_OK")
</pallas_src>

<mosaic_0001>
module attributes {stable_mosaic.version = 11 : i64} {
  func.func @discriminator_kernel(%arg0: i32, %arg1: memref<8x64xf32, #tpu.memory_space<vmem>>, %arg2: memref<128x64xf32, #tpu.memory_space<vmem>>, %arg3: memref<128x1xf32, #tpu.memory_space<vmem>>, %arg4: memref<128x1xf32, #tpu.memory_space<vmem>>, %arg5: memref<1x1xf32, #tpu.memory_space<smem>>, %arg6: memref<1x1x8xf32, #tpu.memory_space<vmem>>) attributes {dimension_semantics = [#tpu.dimension_semantics<parallel>], iteration_bounds = array<i64: 1>, scalar_prefetch = 0 : i64, scratch_operands = 0 : i64, tpu.core_type = #tpu.core_type<tc>, window_params = [{transform_indices = @transform_0, window_bounds = array<i64: 8, 64>}, {pipeline_mode = #tpu.pipeline_mode<synchronous>, transform_indices = @transform_1, window_bounds = array<i64: 128, 64>}, {pipeline_mode = #tpu.pipeline_mode<synchronous>, transform_indices = @transform_2, window_bounds = array<i64: 128, 1>}, {pipeline_mode = #tpu.pipeline_mode<synchronous>, transform_indices = @transform_3, window_bounds = array<i64: 128, 1>}, {transform_indices = @transform_4, window_bounds = array<i64: 1, 1>}, {transform_indices = @transform_5, window_bounds = array<i64: 1, 1, 8>}]} {
    %c0 = arith.constant 0 : index
    %c0_0 = arith.constant 0 : index
    %0 = vector.load %arg1[%c0, %c0_0] : memref<8x64xf32, #tpu.memory_space<vmem>>, vector<8x64xf32>
    %1 = arith.truncf %0 : vector<8x64xf32> to vector<8x64xbf16>
    %c0_1 = arith.constant 0 : index
    %c0_2 = arith.constant 0 : index
    %2 = vector.load %arg2[%c0_1, %c0_2] : memref<128x64xf32, #tpu.memory_space<vmem>>, vector<128x64xf32>
    %3 = arith.truncf %2 : vector<128x64xf32> to vector<128x64xbf16>
    %cst = arith.constant dense<0.000000e+00> : vector<128x8xf32>
    %4 = tpu.matmul %3, %1, %cst {dimension_numbers = #tpu.dot_dimension_numbers<[1], [1], [0], [0], [0, 0, 1, 0], [], []>} : vector<128x64xbf16>, vector<8x64xbf16>, vector<128x8xf32> -> vector<128x8xf32>
    %c0_3 = arith.constant 0 : index
    %c0_4 = arith.constant 0 : index
    %5 = vector.load %arg3[%c0_3, %c0_4] : memref<128x1xf32, #tpu.memory_space<vmem>>, vector<128x1xf32>
    %6 = vector.broadcast %5 : vector<128x1xf32> to vector<128x8xf32>
    %7 = arith.addf %4, %6 : vector<128x8xf32>
    %cst_5 = arith.constant 0.000000e+00 : f32
    %8 = vector.broadcast %cst_5 : f32 to vector<128x8xf32>
    %9 = arith.maximumf %7, %8 : vector<128x8xf32>
    %c0_6 = arith.constant 0 : index
    %c0_7 = arith.constant 0 : index
    %10 = vector.load %arg4[%c0_6, %c0_7] : memref<128x1xf32, #tpu.memory_space<vmem>>, vector<128x1xf32>
    %11 = vector.broadcast %10 : vector<128x1xf32> to vector<128x8xf32>
    %12 = arith.mulf %9, %11 : vector<128x8xf32>
    %cst_8 = arith.constant dense<0.000000e+00> : vector<8xf32>
    %13 = vector.multi_reduction <add>, %12, %cst_8 [0] : vector<128x8xf32> to vector<8xf32>
    %14 = vector.shape_cast %13 : vector<8xf32> to vector<1x8xf32>
    %c0_9 = arith.constant 0 : index
    %c0_10 = arith.constant 0 : index
    %15 = memref.load %arg5[%c0_9, %c0_10] : memref<1x1xf32, #tpu.memory_space<smem>>
    %16 = vector.broadcast %15 : f32 to vector<1x8xf32>
    %17 = arith.addf %14, %16 : vector<1x8xf32>
    %18 = arith.negf %17 : vector<1x8xf32>
    %19 = math.exp %18 : vector<1x8xf32>
    %cst_11 = arith.constant 1.000000e+00 : f32
    %20 = vector.broadcast %cst_11 : f32 to vector<1x8xf32>
    %21 = arith.addf %20, %19 : vector<1x8xf32>
    %22 = arith.divf %20, %21 : vector<1x8xf32>
    %c0_12 = arith.constant 0 : index
    %c0_13 = arith.constant 0 : index
    %c0_14 = arith.constant 0 : index
    %23 = vector.load %arg6[%c0_12, %c0_13, %c0_14] : memref<1x1x8xf32, #tpu.memory_space<vmem>>, vector<1x1x8xf32>
    %24 = vector.shape_cast %23 : vector<1x1x8xf32> to vector<1x8xf32>
    %25 = vector.shape_cast %22 : vector<1x8xf32> to vector<1x1x8xf32>
    tpu.vector_store %arg6[%c0_12, %c0_13, %c0_14], %25 {strides = array<i32>} : memref<1x1x8xf32, #tpu.memory_space<vmem>>, vector<1x1x8xf32>,
    return
  }
  func.func @transform_0(%arg0: i32) -> (i32, i32) {
    %c0_i32 = arith.constant 0 : i32
    %c0_i32_0 = arith.constant 0 : i32
    return %arg0, %c0_i32 : i32, i32
  }
  func.func @transform_1(%arg0: i32) -> (i32, i32) {
    %c0_i32 = arith.constant 0 : i32
    %c0_i32_0 = arith.constant 0 : i32
    %c0_i32_1 = arith.constant 0 : i32
    return %c0_i32, %c0_i32_0 : i32, i32
  }
  func.func @transform_2(%arg0: i32) -> (i32, i32) {
    %c0_i32 = arith.constant 0 : i32
    %c0_i32_0 = arith.constant 0 : i32
    %c0_i32_1 = arith.constant 0 : i32
    return %c0_i32, %c0_i32_0 : i32, i32
  }
  func.func @transform_3(%arg0: i32) -> (i32, i32) {
    %c0_i32 = arith.constant 0 : i32
    %c0_i32_0 = arith.constant 0 : i32
    %c0_i32_1 = arith.constant 0 : i32
    return %c0_i32, %c0_i32_0 : i32, i32
  }
  func.func @transform_4(%arg0: i32) -> (i32, i32) {
    %c0_i32 = arith.constant 0 : i32
    %c0_i32_0 = arith.constant 0 : i32
    %c0_i32_1 = arith.constant 0 : i32
    return %c0_i32, %c0_i32_0 : i32, i32
  }
  func.func @transform_5(%arg0: i32) -> (i32, i32, i32) {
    %c0_i32 = arith.constant 0 : i32
    %c0_i32_0 = arith.constant 0 : i32
    %c0_i32_1 = arith.constant 0 : i32
    return %arg0, %c0_i32, %c0_i32_0 : i32, i32, i32
  }
}

</mosaic_0001>

<llo_original>
// kernel: tpu_custom_call.1
$region0: #{tpu_custom_call.1}
  #allocation0 [shape = 'u32[]', space=smem, size = 0x4, offset = 0x4, fixed_abs, tag = 'smem constant byte address 0x4 - core index']
  #allocation1 [shape = 'u32[144,128]{1,0:T(1,128)}', space=vmem, size = 0x12000, scoped, tag = 'internal scratch']
  #allocation2 [shape = 'f32[1,1]{1,0:T(1,128)S(6)}', space=smem, size = 0x200, scoped, tag = 'scoped memory for tpu_custom_call.1']
  %s0 = inlined_call_operand.vmem [shape: f32[8,64], index: 0, kind: input, shape index: {}]
  %s1 = inlined_call_operand.vmem [shape: f32[128,64], index: 1, kind: input, shape index: {}]
  %s2 = inlined_call_operand.vmem [shape: f32[128,1], index: 2, kind: input, shape index: {}]
  %s3 = inlined_call_operand.vmem [shape: f32[128,1], index: 3, kind: input, shape index: {}]
  %s4 = inlined_call_operand.<no memory space> [shape: f32[1,1], index: 4, kind: input, shape index: {}]
  %s5 = inlined_call_operand.hbm [shape: f32[1,1,8], index: 5, kind: output, shape index: {}]
  %s6 = sld [smem:[#allocation0]]
  $region30: #{tpu_custom_call.1} parent=0
    _
  %s8 = ssub.s32 1, %s6
  %s9 = scalar_select 0, %s8, %s6
  %10 = sst [smem:[#allocation2]] %s4
  $region1: #{tpu_custom_call.1} parent=0
    #allocation3 [shape = 'u8[512]{0}', space=vmem, size = 0x400, scoped, tag = 'output window, operand 0, single buffered']
    #allocation4 [shape = 's32[1]{0}', space=sflag, size = 0x4, scoped, tag = 'scoped memory for tpu_custom_call.1']
    %11 = vsyncpa [#allocation4], 0
    // Predicated region
    $region2: #{tpu_custom_call.1} parent=1 // pred_check
      _
    $region3: #{tpu_custom_call.1} parent=1 // pred_check_branch
      %13 = sbr.rel (0) target = $region5
    $region4: #{tpu_custom_call.1} parent=1 // pred_region
      _
    $region5: #{tpu_custom_call.1} parent=1 // pred_fallthru
      _
    // Predicated region
    $region6: #{tpu_custom_call.1} parent=1 // pred_check
      _
    $region7: #{tpu_custom_call.1} parent=1 // pred_check_branch
      %15 = sbr.rel (0) target = $region9
    $region8: #{tpu_custom_call.1} parent=1 // pred_region
      _
    $region9: #{tpu_custom_call.1} parent=1 // pred_fallthru
      _
    // Predicated region
    $region10: #{tpu_custom_call.1} parent=1 // pred_check
      _
    $region11: #{tpu_custom_call.1} parent=1 // pred_check_branch
      %17 = sbr.rel (0) target = $region13
    $region12: #{tpu_custom_call.1} parent=1 // pred_region
      _
    $region13: #{tpu_custom_call.1} parent=1 // pred_fallthru
      _
    // Predicated region
    $region14: #{tpu_custom_call.1} parent=1 // pred_check
      _
    $region15: #{tpu_custom_call.1} parent=1 // pred_check_branch
      %19 = sbr.rel (0) target = $region17
    $region16: #{tpu_custom_call.1} parent=1 // pred_region
      _
    $region17: #{tpu_custom_call.1} parent=1 // pred_fallthru
      _
    // Predicated region
    $region18: #{tpu_custom_call.1} parent=1 // pred_check
      _
    $region19: #{tpu_custom_call.1} parent=1 // pred_check_branch
      %21 = sbr.rel (0) target = $region21
    $region20: #{tpu_custom_call.1} parent=1 // pred_region
      _
    $region21: #{tpu_custom_call.1} parent=1 // pred_fallthru
      _
    %v23 = vld [vmem:[%s0] sm:$0xff]
    %v24 = vpack.c.bf16 %v23, %v23
    %v25 = vld [vmem:[%s1] sm:$0xff]
    %v26 = vld [vmem:[%s1 + $0x8] sm:$0xff]
    %v27 = vld [vmem:[%s1 + $0x10] sm:$0xff]
    %v28 = vld [vmem:[%s1 + $0x18] sm:$0xff]
    %v29 = vld [vmem:[%s1 + $0x20] sm:$0xff]
    %v30 = vld [vmem:[%s1 + $0x28] sm:$0xff]
    %v31 = vld [vmem:[%s1 + $0x30] sm:$0xff]
    %v32 = vld [vmem:[%s1 + $0x38] sm:$0xff]
    %v33 = vld [vmem:[%s1 + $0x40] sm:$0xff]
    %v34 = vld [vmem:[%s1 + $0x48] sm:$0xff]
    %v35 = vld [vmem:[%s1 + $0x50] sm:$0xff]
    %v36 = vld [vmem:[%s1 + $0x58] sm:$0xff]
    %v37 = vld [vmem:[%s1 + $0x60] sm:$0xff]
    %v38 = vld [vmem:[%s1 + $0x68] sm:$0xff]
    %v39 = vld [vmem:[%s1 + $0x70] sm:$0xff]
    %v40 = vld [vmem:[%s1 + $0x78] sm:$0xff]
    %v41 = vpack.c.bf16 %v26, %v25
    %v42 = vpack.c.bf16 %v28, %v27
    %v43 = vpack.c.bf16 %v30, %v29
    %v44 = vpack.c.bf16 %v32, %v31
    %v45 = vpack.c.bf16 %v34, %v33
    %v46 = vpack.c.bf16 %v36, %v35
    %v47 = vpack.c.bf16 %v38, %v37
    %v48 = vpack.c.bf16 %v40, %v39
    %v49 = vld [vmem:[%s2] sm:$0xff]
    %v50 = vld [vmem:[%s2 + $0x8] sm:$0xff]
    %v51 = vld [vmem:[%s2 + $0x10] sm:$0xff]
    %v52 = vld [vmem:[%s2 + $0x18] sm:$0xff]
    %v53 = vld [vmem:[%s2 + $0x20] sm:$0xff]
    %v54 = vld [vmem:[%s2 + $0x28] sm:$0xff]
    %v55 = vld [vmem:[%s2 + $0x30] sm:$0xff]
    %v56 = vld [vmem:[%s2 + $0x38] sm:$0xff]
    %v57 = vld [vmem:[%s2 + $0x40] sm:$0xff]
    %v58 = vld [vmem:[%s2 + $0x48] sm:$0xff]
    %v59 = vld [vmem:[%s2 + $0x50] sm:$0xff]
    %v60 = vld [vmem:[%s2 + $0x58] sm:$0xff]
    %v61 = vld [vmem:[%s2 + $0x60] sm:$0xff]
    %v62 = vld [vmem:[%s2 + $0x68] sm:$0xff]
    %v63 = vld [vmem:[%s2 + $0x70] sm:$0xff]
    %v64 = vld [vmem:[%s2 + $0x78] sm:$0xff]
    %66 = vset.pattern.permute.xlu0 0
    %67 = vperm.xlu0 %66, %v49
    %v68 = vpop.permute.xlu0 %67
    %71 = vset.pattern.permute.xlu0 0
    %72 = vperm.xlu0 %71, %v50
    %v73 = vpop.permute.xlu0 %72
    %76 = vset.pattern.permute.xlu0 0
    %77 = vperm.xlu0 %76, %v51
    %v78 = vpop.permute.xlu0 %77
    %81 = vset.pattern.permute.xlu0 0
    %82 = vperm.xlu0 %81, %v52
    %v83 = vpop.permute.xlu0 %82
    %86 = vset.pattern.permute.xlu0 0
    %87 = vperm.xlu0 %86, %v53
    %v88 = vpop.permute.xlu0 %87
    %91 = vset.pattern.permute.xlu0 0
    %92 = vperm.xlu0 %91, %v54
    %v93 = vpop.permute.xlu0 %92
    %96 = vset.pattern.permute.xlu0 0
    %97 = vperm.xlu0 %96, %v55
    %v98 = vpop.permute.xlu0 %97
    %101 = vset.pattern.permute.xlu0 0
    %102 = vperm.xlu0 %101, %v56
    %v103 = vpop.permute.xlu0 %102
    %106 = vset.pattern.permute.xlu0 0
    %107 = vperm.xlu0 %106, %v57
    %v108 = vpop.permute.xlu0 %107
    %111 = vset.pattern.permute.xlu0 0
    %112 = vperm.xlu0 %111, %v58
    %v113 = vpop.permute.xlu0 %112
    %116 = vset.pattern.permute.xlu0 0
    %117 = vperm.xlu0 %116, %v59
    %v118 = vpop.permute.xlu0 %117
    %121 = vset.pattern.permute.xlu0 0
    %122 = vperm.xlu0 %121, %v60
    %v123 = vpop.permute.xlu0 %122
    %126 = vset.pattern.permute.xlu0 0
    %127 = vperm.xlu0 %126, %v61
    %v128 = vpop.permute.xlu0 %127
    %131 = vset.pattern.permute.xlu0 0
    %132 = vperm.xlu0 %131, %v62
    %v133 = vpop.permute.xlu0 %132
    %136 = vset.pattern.permute.xlu0 0
    %137 = vperm.xlu0 %136, %v63
    %v138 = vpop.permute.xlu0 %137
    %141 = vset.pattern.permute.xlu0 0
    %142 = vperm.xlu0 %141, %v64
    %v143 = vpop.permute.xlu0 %142
    %vm145 = vcmask 523264
    %v147 = vsel %vm145, %v41, 0
    %v150 = vsel %vm145, %v42, 0
    %v153 = vsel %vm145, %v43, 0
    %v156 = vsel %vm145, %v44, 0
    %v159 = vsel %vm145, %v45, 0
    %v162 = vsel %vm145, %v46, 0
    %v165 = vsel %vm145, %v47, 0
    %v168 = vsel %vm145, %v48, 0
    %v171 = vsel %vm145, %v24, 0
    %173 = vmatprep.subr.bf16.mxu0 0
    %174 = vmatpush1.bf16.xpose.msra.mxu0 %v171
    %175 = vmatprep.subr.bf16.mxu0 0
    %176 = vmatpush1.bf16.xpose.msra.mxu0 0
    %177 = vmatprep.subr.bf16.mxu0 0
    %178 = vmatpush1.bf16.xpose.msra.mxu0 0
    %179 = vmatprep.subr.bf16.mxu0 0
    %180 = vmatpush1.bf16.xpose.msra.mxu0 0
    %181 = vmatprep.subr.bf16.mxu0 0
    %182 = vmatpush1.bf16.xpose.msra.mxu0 0
    %183 = vmatprep.subr.bf16.mxu0 0
    %184 = vmatpush1.bf16.xpose.msra.mxu0 0
    %185 = vmatprep.subr.bf16.mxu0 0
    %186 = vmatpush1.bf16.xpose.msra.mxu0 0
    %187 = vmatprep.subr.bf16.mxu0 0
    %188 = vmatpush1.bf16.xpose.msra.mxu0 0
    %189 = vmatprep.subr.bf16.mxu0 0
    %190 = vmatpush1.bf16.xpose.msra.mxu0 0
    %191 = vmatprep.subr.bf16.mxu0 0
    %192 = vmatpush1.bf16.xpose.msra.mxu0 0
    %193 = vmatprep.subr.bf16.mxu0 0
    %194 = vmatpush1.bf16.xpose.msra.mxu0 0
    %195 = vmatprep.subr.bf16.mxu0 0
    %196 = vmatpush1.bf16.xpose.msra.mxu0 0
    %197 = vmatprep.subr.bf16.mxu0 0
    %198 = vmatpush1.bf16.xpose.msra.mxu0 0
    %199 = vmatprep.subr.bf16.mxu0 0
    %200 = vmatpush1.bf16.xpose.msra.mxu0 0
    %201 = vmatprep.subr.bf16.mxu0 0
    %202 = vmatpush1.bf16.xpose.msra.mxu0 0
    %203 = vmatprep.subr.bf16.mxu0 0
    %204 = vmatpush1.bf16.xpose.msra.mxu0 0
    %205 = vmatprep.mubr.bf16.mxu0 0
    %206 = vmatmul.mubr.bf16.gmra.mrb[0].mxu0 %v147
    %v207 = vpop.f32.mrb[0].mxu0
    %v208 = vadd.f32 %v68, %v207
    %v209 = vpop.f32.mrb[0].mxu0
    %v210 = vpop.f32.mrb[0].mxu0
    %v211 = vadd.f32 %v73, %v210
    %v212 = vpop.f32.mrb[0].mxu0
    %213 = vmatprep.mubr.bf16.mxu0 0
    %214 = vmatmul.mubr.bf16.gmra.mrb[0].mxu0 %v150
    %v215 = vpop.f32.mrb[0].mxu0
    %v216 = vadd.f32 %v78, %v215
    %v217 = vpop.f32.mrb[0].mxu0
    %v218 = vpop.f32.mrb[0].mxu0
    %v219 = vadd.f32 %v83, %v218
    %v220 = vpop.f32.mrb[0].mxu0
    %221 = vmatprep.mubr.bf16.mxu0 0
    %222 = vmatmul.mubr.bf16.gmra.mrb[0].mxu0 %v153
    %v223 = vpop.f32.mrb[0].mxu0
    %v224 = vadd.f32 %v88, %v223
    %v225 = vpop.f32.mrb[0].mxu0
    %v226 = vpop.f32.mrb[0].mxu0
    %v227 = vadd.f32 %v93, %v226
    %v228 = vpop.f32.mrb[0].mxu0
    %229 = vmatprep.mubr.bf16.mxu0 0
    %230 = vmatmul.mubr.bf16.gmra.mrb[0].mxu0 %v156
    %v231 = vpop.f32.mrb[0].mxu0
    %v232 = vadd.f32 %v98, %v231
    %v233 = vpop.f32.mrb[0].mxu0
    %v234 = vpop.f32.mrb[0].mxu0
    %v235 = vadd.f32 %v103, %v234
    %v236 = vpop.f32.mrb[0].mxu0
    %237 = vmatprep.mubr.bf16.mxu0 0
    %238 = vmatmul.mubr.bf16.gmra.mrb[0].mxu0 %v159
    %v239 = vpop.f32.mrb[0].mxu0
    %v240 = vadd.f32 %v108, %v239
    %v241 = vpop.f32.mrb[0].mxu0
    %v242 = vpop.f32.mrb[0].mxu0
    %v243 = vadd.f32 %v113, %v242
    %v244 = vpop.f32.mrb[0].mxu0
    %245 = vmatprep.mubr.bf16.mxu0 0
    %246 = vmatmul.mubr.bf16.gmra.mrb[0].mxu0 %v162
    %v247 = vpop.f32.mrb[0].mxu0
    %v248 = vadd.f32 %v118, %v247
    %v249 = vpop.f32.mrb[0].mxu0
    %v250 = vpop.f32.mrb[0].mxu0
    %v251 = vadd.f32 %v123, %v250
    %v252 = vpop.f32.mrb[0].mxu0
    %253 = vmatprep.mubr.bf16.mxu0 0
    %254 = vmatmul.mubr.bf16.gmra.mrb[0].mxu0 %v165
    %v255 = vpop.f32.mrb[0].mxu0
    %v256 = vadd.f32 %v128, %v255
    %v257 = vpop.f32.mrb[0].mxu0
    %v258 = vpop.f32.mrb[0].mxu0
    %v259 = vadd.f32 %v133, %v258
    %v260 = vpop.f32.mrb[0].mxu0
    %261 = vmatprep.mubr.bf16.mxu0 0
    %262 = vmatmul.mubr.bf16.gmra.mrb[0].mxu0 %v168
    %v263 = vpop.f32.mrb[0].mxu0
    %v264 = vadd.f32 %v138, %v263
    %v265 = vpop.f32.mrb[0].mxu0
    %v266 = vpop.f32.mrb[0].mxu0
    %v267 = vadd.f32 %v143, %v266
    %v268 = vpop.f32.mrb[0].mxu0
    %269 = vdwg.mxu0
    %v270 = vmax.f32 %v208, 0.0
    %v271 = vmax.f32 %v211, 0.0
    %v272 = vmax.f32 %v216, 0.0
    %v273 = vmax.f32 %v219, 0.0
    %v274 = vmax.f32 %v224, 0.0
    %v275 = vmax.f32 %v227, 0.0
    %v276 = vmax.f32 %v232, 0.0
    %v277 = vmax.f32 %v235, 0.0
    %v278 = vmax.f32 %v240, 0.0
    %v279 = vmax.f32 %v243, 0.0
    %v280 = vmax.f32 %v248, 0.0
    %v281 = vmax.f32 %v251, 0.0
    %v282 = vmax.f32 %v256, 0.0
    %v283 = vmax.f32 %v259, 0.0
    %v284 = vmax.f32 %v264, 0.0
    %v285 = vmax.f32 %v267, 0.0
    %v286 = vld [vmem:[%s3] sm:$0xff]
    %v287 = vld [vmem:[%s3 + $0x8] sm:$0xff]
    %v288 = vld [vmem:[%s3 + $0x10] sm:$0xff]
    %v289 = vld [vmem:[%s3 + $0x18] sm:$0xff]
    %v290 = vld [vmem:[%s3 + $0x20] sm:$0xff]
    %v291 = vld [vmem:[%s3 + $0x28] sm:$0xff]
    %v292 = vld [vmem:[%s3 + $0x30] sm:$0xff]
    %v293 = vld [vmem:[%s3 + $0x38] sm:$0xff]
    %v294 = vld [vmem:[%s3 + $0x40] sm:$0xff]
    %v295 = vld [vmem:[%s3 + $0x48] sm:$0xff]
    %v296 = vld [vmem:[%s3 + $0x50] sm:$0xff]
    %v297 = vld [vmem:[%s3 + $0x58] sm:$0xff]
    %v298 = vld [vmem:[%s3 + $0x60] sm:$0xff]
    %v299 = vld [vmem:[%s3 + $0x68] sm:$0xff]
    %v300 = vld [vmem:[%s3 + $0x70] sm:$0xff]
    %v301 = vld [vmem:[%s3 + $0x78] sm:$0xff]
    %303 = vset.pattern.permute.xlu0 0
    %304 = vperm.xlu0 %303, %v286
    %v305 = vpop.permute.xlu0 %304
    %308 = vset.pattern.permute.xlu0 0
    %309 = vperm.xlu0 %308, %v287
    %v310 = vpop.permute.xlu0 %309
    %313 = vset.pattern.permute.xlu0 0
    %314 = vperm.xlu0 %313, %v288
    %v315 = vpop.permute.xlu0 %314
    %318 = vset.pattern.permute.xlu0 0
    %319 = vperm.xlu0 %318, %v289
    %v320 = vpop.permute.xlu0 %319
    %323 = vset.pattern.permute.xlu0 0
    %324 = vperm.xlu0 %323, %v290
    %v325 = vpop.permute.xlu0 %324
    %328 = vset.pattern.permute.xlu0 0
    %329 = vperm.xlu0 %328, %v291
    %v330 = vpop.permute.xlu0 %329
    %333 = vset.pattern.permute.xlu0 0
    %334 = vperm.xlu0 %333, %v292
    %v335 = vpop.permute.xlu0 %334
    %338 = vset.pattern.permute.xlu0 0
    %339 = vperm.xlu0 %338, %v293
    %v340 = vpop.permute.xlu0 %339
    %343 = vset.pattern.permute.xlu0 0
    %344 = vperm.xlu0 %343, %v294
    %v345 = vpop.permute.xlu0 %344
    %348 = vset.pattern.permute.xlu0 0
    %349 = vperm.xlu0 %348, %v295
    %v350 = vpop.permute.xlu0 %349
    %353 = vset.pattern.permute.xlu0 0
    %354 = vperm.xlu0 %353, %v296
    %v355 = vpop.permute.xlu0 %354
    %358 = vset.pattern.permute.xlu0 0
    %359 = vperm.xlu0 %358, %v297
    %v360 = vpop.permute.xlu0 %359
    %363 = vset.pattern.permute.xlu0 0
    %364 = vperm.xlu0 %363, %v298
    %v365 = vpop.permute.xlu0 %364
    %368 = vset.pattern.permute.xlu0 0
    %369 = vperm.xlu0 %368, %v299
    %v370 = vpop.permute.xlu0 %369
    %373 = vset.pattern.permute.xlu0 0
    %374 = vperm.xlu0 %373, %v300
    %v375 = vpop.permute.xlu0 %374
    %378 = vset.pattern.permute.xlu0 0
    %379 = vperm.xlu0 %378, %v301
    %v380 = vpop.permute.xlu0 %379
    %v382 = vmul.f32 %v270, %v305
    %v383 = vmul.f32 %v271, %v310
    %v384 = vmul.f32 %v272, %v315
    %v385 = vmul.f32 %v273, %v320
    %v386 = vmul.f32 %v274, %v325
    %v387 = vmul.f32 %v275, %v330
    %v388 = vmul.f32 %v276, %v335
    %v389 = vmul.f32 %v277, %v340
    %v390 = vmul.f32 %v278, %v345
    %v391 = vmul.f32 %v279, %v350
    %v392 = vmul.f32 %v280, %v355
    %v393 = vmul.f32 %v281, %v360
    %v394 = vmul.f32 %v282, %v365
    %v395 = vmul.f32 %v283, %v370
    %v396 = vmul.f32 %v284, %v375
    %v397 = vmul.f32 %v285, %v380
    %vm398 = vcmask 64512
    %v399 = vsel %vm398, %v382, 0.0
    %v400 = vsel %vm398, %v383, 0.0
    %v401 = vadd.f32 %v399, %v400
    %v402 = vsel %vm398, %v384, 0.0
    %v403 = vadd.f32 %v401, %v402
    %v404 = vsel %vm398, %v385, 0.0
    %v405 = vadd.f32 %v403, %v404
    %v406 = vsel %vm398, %v386, 0.0
    %v407 = vadd.f32 %v405, %v406
    %v408 = vsel %vm398, %v387, 0.0
    %v409 = vadd.f32 %v407, %v408
    %v410 = vsel %vm398, %v388, 0.0
    %v411 = vadd.f32 %v409, %v410
    %v412 = vsel %vm398, %v389, 0.0
    %v413 = vadd.f32 %v411, %v412
    %v414 = vsel %vm398, %v390, 0.0
    %v415 = vadd.f32 %v413, %v414
    %v416 = vsel %vm398, %v391, 0.0
    %v417 = vadd.f32 %v415, %v416
    %v418 = vsel %vm398, %v392, 0.0
    %v419 = vadd.f32 %v417, %v418
    %v420 = vsel %vm398, %v393, 0.0
    %v421 = vadd.f32 %v419, %v420
    %v422 = vsel %vm398, %v394, 0.0
    %v423 = vadd.f32 %v421, %v422
    %v424 = vsel %vm398, %v395, 0.0
    %v425 = vadd.f32 %v423, %v424
    %v426 = vsel %vm398, %v396, 0.0
    %v427 = vadd.f32 %v425, %v426
    %v428 = vsel %vm398, %v397, 0.0
    %v429 = vadd.f32 %v427, %v428
    %v430 = vrot.slane %v429, 4
    %v431 = vadd.f32 %v429, %v430
    %v432 = vrot.slane %v431, 2
    %v433 = vadd.f32 %v431, %v432
    %v434 = vrot.slane %v433, 1
    %v435 = vadd.f32 %v433, %v434
    %s436 = sld [smem:[#allocation2]]
    %v437 = vstv %s436
    %v438 = vadd.f32 %v435, %v437
    %v439 = vxor.u32 %v438, 2147483648
    %v440 = vmul.f32 %v439, 1.442695
    %v441 = vpow.pop %v440
    %v442 = vadd.f32 %v441, 1.0
    %v443 = vrcp.pop %v442
    %v444 = vmul.f32 1.0, %v443
    %vm445 = vcmask 57344
    %446 = vst.msk [vmem:[#allocation3] sm:$0x1] %vm445, %v444
    // Predicated region
    $region22: #{tpu_custom_call.1} parent=1 // pred_check
      _
    $region23: #{tpu_custom_call.1} parent=1 // pred_check_branch
      %448 = sbr.rel (0) target = $region25
    $region24: #{tpu_custom_call.1} parent=1 // pred_region
      %s450 = ssub.s32 16, 16
      %451 = vsyncadd [#allocation4], %s450
      %s453 = sshll.u32 [#allocation3], 4
      %s454 = int_to_ptr.vmem [resolvable:$true] %s453
      %456 = dma.vmem_to_hbm [thread:$0]  %s454, 16, %s5, [#allocation4]
    $region25: #{tpu_custom_call.1} parent=1 // pred_fallthru
      _
    // Predicated region
    $region26: #{tpu_custom_call.1} parent=1 // pred_check
      _
    $region27: #{tpu_custom_call.1} parent=1 // pred_check_branch
      %458 = sbr.rel (0) target = $region29
    $region28: #{tpu_custom_call.1} parent=1 // pred_region
      %459 = dma.done [#allocation4], 16
    $region29: #{tpu_custom_call.1} parent=1 // pred_fallthru
      _
    %460 = vsyncpa [#allocation4], 1

</llo_original>
